<compile_context>
chip_gen: v5e
topology: v5e:2x2
jax: 0.10.0
libtpu: 0.0.40
codegen_flags: <defaults>
</compile_context>

<pallas_src>
import functools

import jax
import jax.numpy as jnp
from jax import lax
from jax.experimental import pallas as pl
from jax.experimental.pallas import tpu as pltpu


def adain_kernel(gamma_ref, beta_ref, x_ref, o_ref, *, eps):
    # gamma_ref/beta_ref: (1, TC, 1)   per-(n, channel-tile) affine params
    # x_ref/o_ref:        (1, TC, HW)  channel tile of one batch element
    x = x_ref[0]                                   # (TC, HW), native dtype
    xf = x.astype(jnp.float32)
    inv_hw = 1.0 / x.shape[-1]

    # One reduction sweep: sum and sum-of-squares (f32 accumulation).
    s = jnp.sum(xf, axis=-1, keepdims=True)        # (TC, 1)
    sq = jnp.sum(xf * xf, axis=-1, keepdims=True)  # (TC, 1)
    mean = s * inv_hw
    var = sq * inv_hw - mean * mean                # biased variance
    inv = lax.rsqrt(var + eps)                     # (TC, 1)

    gamma = gamma_ref[0].astype(jnp.float32)       # (TC, 1)
    beta = beta_ref[0].astype(jnp.float32)         # (TC, 1)
    a = gamma * inv                                # (TC, 1)
    b = beta - mean * a                            # (TC, 1)

    # One scale/add sweep over the tile, lane-dense unmasked store.
    o_ref[0] = (xf * a + b).astype(o_ref.dtype)


def _pick_channel_tile(C, HW, itemsize, target_bytes=2 * 1024 * 1024):
    """Largest channel tile (multiple of 8, dividing C) whose block fits ~target_bytes.

    Falls back to the smallest legal tile if nothing fits, or to C itself when
    C has no multiple-of-8 divisor (small-C case; full-extent block is legal).
    """
    candidates = [d for d in range(8, C + 1, 8) if C % d == 0]
    fitting = [d for d in candidates if d * HW * itemsize <= target_bytes]
    if fitting:
        return max(fitting)
    if candidates:
        return min(candidates)
    return C


def adaptive_instance_norm(x, style, weight, bias, *, eps=1e-5):
    """x: (N, C, H, W), style: (N, style_dim), weight: (2C, style_dim), bias: (2C,)."""
    N, C, H, W = x.shape
    style_dim = style.shape[1]
    HW = H * W
    assert HW % 128 == 0, "H*W must be a multiple of 128 for lane-dense tiles"

    # EqualizedLinear (equal-lr scale sqrt(2/fan_in)) done once in XLA.
    scale = (2.0 / style_dim) ** 0.5
    s_out = (style.astype(jnp.float32)
             @ (weight.astype(jnp.float32) * scale).T
             + bias.astype(jnp.float32))                   # (N, 2C)
    gamma = s_out[:, :C].reshape(N, C, 1)
    beta = s_out[:, C:].reshape(N, C, 1)

    x2 = x.reshape(N, C, HW)
    TC = _pick_channel_tile(C, HW, x.dtype.itemsize)
    grid = (N, C // TC)

    out = pl.pallas_call(
        functools.partial(adain_kernel, eps=eps),
        out_shape=jax.ShapeDtypeStruct((N, C, HW), x.dtype),
        grid=grid,
        in_specs=[
            pl.BlockSpec((1, TC, 1), lambda b, c: (b, c, 0)),   # gamma
            pl.BlockSpec((1, TC, 1), lambda b, c: (b, c, 0)),   # beta
            pl.BlockSpec((1, TC, HW), lambda b, c: (b, c, 0)),  # x tile
        ],
        out_specs=pl.BlockSpec((1, TC, HW), lambda b, c: (b, c, 0)),
        compiler_params=pltpu.CompilerParams(
            dimension_semantics=("parallel", "parallel"),
            # ~2 MiB blocks, double-buffered in+out -> well under this cap on
            # v5e (16 MiB scoped default), v6e, and v7x (64 MiB physical).
            vmem_limit_bytes=32 * 1024 * 1024,
        ),
    )(gamma, beta, x2)

    return out.reshape(N, C, H, W)


def adaptive_instance_norm_ref(x, style, weight, bias, *, eps=1e-5):
    """Pure-JAX reference matching the PyTorch module."""
    N, C, H, W = x.shape
    style_dim = style.shape[1]
    scale = (2.0 / style_dim) ** 0.5
    s_out = style @ (weight * scale).T + bias          # (N, 2C)
    gamma = s_out[:, :C][:, :, None, None]
    beta = s_out[:, C:][:, :, None, None]
    mean = x.mean(axis=(2, 3), keepdims=True)
    var = ((x - mean) ** 2).mean(axis=(2, 3), keepdims=True)
    normed = (x - mean) / jnp.sqrt(var + eps)
    return gamma * normed + beta


if __name__ == "__main__":
    N, C, H, W = 2, 4, 16, 16
    style_dim = 8

    key = jax.random.PRNGKey(0)
    kx, ks, kw = jax.random.split(key, 3)

    x = jax.random.normal(kx, (N, C, H, W), dtype=jnp.float32)
    style = jax.random.normal(ks, (N, style_dim), dtype=jnp.float32)

    # EqualizedLinear parameters: weight ~ N(0,1) (scaled at runtime),
    # bias[:C] = 1 (gamma), bias[C:] = 0 (beta), per the module's __init__.
    weight = jax.random.normal(kw, (2 * C, style_dim), dtype=jnp.float32)
    bias = jnp.concatenate([jnp.ones((C,), jnp.float32), jnp.zeros((C,), jnp.float32)])

    out = adaptive_instance_norm(x, style, weight, bias)
    out = jax.block_until_ready(out)

    ref = adaptive_instance_norm_ref(x, style, weight, bias)
    assert out.shape == (N, C, H, W)
    assert jnp.allclose(out, ref, atol=1e-4, rtol=1e-4)

    print("KERNEL_OK")
</pallas_src>

<mosaic_0001>
module attributes {stable_mosaic.version = 11 : i64} {
  func.func @adain_kernel(%arg0: i32, %arg1: i32, %arg2: memref<1x4x1xf32, #tpu.memory_space<vmem>>, %arg3: memref<1x4x1xf32, #tpu.memory_space<vmem>>, %arg4: memref<1x4x256xf32, #tpu.memory_space<vmem>>, %arg5: memref<1x4x256xf32, #tpu.memory_space<vmem>>) attributes {dimension_semantics = [#tpu.dimension_semantics<parallel>, #tpu.dimension_semantics<parallel>], iteration_bounds = array<i64: 2, 1>, scalar_prefetch = 0 : i64, scratch_operands = 0 : i64, tpu.core_type = #tpu.core_type<tc>, window_params = [{transform_indices = @transform_0, window_bounds = array<i64: 1, 4, 1>}, {transform_indices = @transform_1, window_bounds = array<i64: 1, 4, 1>}, {transform_indices = @transform_2, window_bounds = array<i64: 1, 4, 256>}, {transform_indices = @transform_3, window_bounds = array<i64: 1, 4, 256>}]} {
    %c0 = arith.constant 0 : index
    %c0_0 = arith.constant 0 : index
    %c0_1 = arith.constant 0 : index
    %0 = vector.load %arg4[%c0, %c0_0, %c0_1] : memref<1x4x256xf32, #tpu.memory_space<vmem>>, vector<1x4x256xf32>
    %1 = vector.shape_cast %0 : vector<1x4x256xf32> to vector<4x256xf32>
    %cst = arith.constant dense<0.000000e+00> : vector<4xf32>
    %2 = vector.multi_reduction <add>, %1, %cst [1] : vector<4x256xf32> to vector<4xf32>
    %3 = vector.shape_cast %2 : vector<4xf32> to vector<4x1xf32>
    %4 = arith.mulf %1, %1 : vector<4x256xf32>
    %cst_2 = arith.constant dense<0.000000e+00> : vector<4xf32>
    %5 = vector.multi_reduction <add>, %4, %cst_2 [1] : vector<4x256xf32> to vector<4xf32>
    %6 = vector.shape_cast %5 : vector<4xf32> to vector<4x1xf32>
    %cst_3 = arith.constant 3.906250e-03 : f32
    %7 = vector.broadcast %cst_3 : f32 to vector<4x1xf32>
    %8 = arith.mulf %3, %7 : vector<4x1xf32>
    %cst_4 = arith.constant 3.906250e-03 : f32
    %9 = vector.broadcast %cst_4 : f32 to vector<4x1xf32>
    %10 = arith.mulf %6, %9 : vector<4x1xf32>
    %11 = arith.mulf %8, %8 : vector<4x1xf32>
    %12 = arith.subf %10, %11 : vector<4x1xf32>
    %cst_5 = arith.constant 9.99999974E-6 : f32
    %13 = vector.broadcast %cst_5 : f32 to vector<4x1xf32>
    %14 = arith.addf %12, %13 : vector<4x1xf32>
    %15 = math.rsqrt %14 : vector<4x1xf32>
    %c0_6 = arith.constant 0 : index
    %c0_7 = arith.constant 0 : index
    %c0_8 = arith.constant 0 : index
    %16 = vector.load %arg2[%c0_6, %c0_7, %c0_8] : memref<1x4x1xf32, #tpu.memory_space<vmem>>, vector<1x4x1xf32>
    %17 = vector.shape_cast %16 : vector<1x4x1xf32> to vector<4x1xf32>
    %c0_9 = arith.constant 0 : index
    %c0_10 = arith.constant 0 : index
    %c0_11 = arith.constant 0 : index
    %18 = vector.load %arg3[%c0_9, %c0_10, %c0_11] : memref<1x4x1xf32, #tpu.memory_space<vmem>>, vector<1x4x1xf32>
    %19 = vector.shape_cast %18 : vector<1x4x1xf32> to vector<4x1xf32>
    %20 = arith.mulf %17, %15 : vector<4x1xf32>
    %21 = arith.mulf %8, %20 : vector<4x1xf32>
    %22 = arith.subf %19, %21 : vector<4x1xf32>
    %23 = vector.broadcast %20 : vector<4x1xf32> to vector<4x256xf32>
    %24 = arith.mulf %1, %23 : vector<4x256xf32>
    %25 = vector.broadcast %22 : vector<4x1xf32> to vector<4x256xf32>
    %26 = arith.addf %24, %25 : vector<4x256xf32>
    %c0_12 = arith.constant 0 : index
    %c0_13 = arith.constant 0 : index
    %c0_14 = arith.constant 0 : index
    %27 = vector.load %arg5[%c0_12, %c0_13, %c0_14] : memref<1x4x256xf32, #tpu.memory_space<vmem>>, vector<1x4x256xf32>
    %28 = vector.shape_cast %27 : vector<1x4x256xf32> to vector<4x256xf32>
    %29 = vector.shape_cast %26 : vector<4x256xf32> to vector<1x4x256xf32>
    tpu.vector_store %arg5[%c0_12, %c0_13, %c0_14], %29 {strides = array<i32>} : memref<1x4x256xf32, #tpu.memory_space<vmem>>, vector<1x4x256xf32>,
    return
  }
  func.func @transform_0(%arg0: i32, %arg1: i32) -> (i32, i32, i32) {
    %c0_i32 = arith.constant 0 : i32
    %c0_i32_0 = arith.constant 0 : i32
    return %arg0, %arg1, %c0_i32 : i32, i32, i32
  }
  func.func @transform_1(%arg0: i32, %arg1: i32) -> (i32, i32, i32) {
    %c0_i32 = arith.constant 0 : i32
    %c0_i32_0 = arith.constant 0 : i32
    return %arg0, %arg1, %c0_i32 : i32, i32, i32
  }
  func.func @transform_2(%arg0: i32, %arg1: i32) -> (i32, i32, i32) {
    %c0_i32 = arith.constant 0 : i32
    %c0_i32_0 = arith.constant 0 : i32
    return %arg0, %arg1, %c0_i32 : i32, i32, i32
  }
  func.func @transform_3(%arg0: i32, %arg1: i32) -> (i32, i32, i32) {
    %c0_i32 = arith.constant 0 : i32
    %c0_i32_0 = arith.constant 0 : i32
    return %arg0, %arg1, %c0_i32 : i32, i32, i32
  }
}

</mosaic_0001>

<llo_original>
// kernel: tpu_custom_call.1
$region0: #{tpu_custom_call.1}
  #allocation0 [shape = 'u32[]', space=smem, size = 0x4, offset = 0x4, fixed_abs, tag = 'smem constant byte address 0x4 - core index']
  #allocation1 [shape = 'u32[72,128]{1,0:T(1,128)}', space=vmem, size = 0x9000, scoped, tag = 'internal scratch']
  %s0 = inlined_call_operand.vmem [shape: f32[2,4,1], index: 0, kind: input, shape index: {}]
  %s1 = inlined_call_operand.vmem [shape: f32[2,4,1], index: 1, kind: input, shape index: {}]
  %s2 = inlined_call_operand.vmem [shape: f32[2,4,256], index: 2, kind: input, shape index: {}]
  %s3 = inlined_call_operand.hbm [shape: f32[2,4,256], index: 3, kind: output, shape index: {}]
  %s4 = sld [smem:[#allocation0]]
  $region45: #{tpu_custom_call.1} parent=0
    _
  %s6 = ssub.s32 1, %s4
  %s7 = scalar_select 0, %s6, %s4
  $region1: #{tpu_custom_call.1} parent=0
    #allocation2 [shape = 'u8[8192]{0}', space=vmem, size = 0x2000, scoped, tag = 'output window, operand 0']
    #allocation3 [shape = 's32[2]{0}', space=sflag, size = 0x8, scoped, tag = 'scoped memory for tpu_custom_call.1']
    %8 = vsyncpa [#allocation3], 0
    %s9 = scalar_lea.sflag [#allocation3], 1
    %10 = vsyncpa %s9, 0
    loop: start=0, step=1, limit=4
    $region2: #{tpu_custom_call.1} parent=1 // loop_pre_header
      _
    $region3: #{tpu_custom_call.1} parent=1 // loop_header
      %s12 = sphi 0, %s16
      %p13 = scmp.ge.s32.totalorder %s12, 4
      %s19 = sphi 0, %s31
      %s20 = sphi 0, %s27
      %s21 = sphi 0, %s19
      %s22 = sphi 0, %s20
      %s23 = sphi 0, %s21
      %s24 = sphi 0, %s22
      %s36 = sphi 0, %s38
      %s39 = sphi 0, %s36
      %s40 = sphi 0, %s39
      %s56 = sphi 0, %s40
      %s64 = sphi 0, %s66
      %s67 = sphi 0, %s64
      %s68 = sphi 0, %s67
      %s84 = sphi 0, %s68
      %s92 = sphi 0, %s94
      %s95 = sphi 0, %s92
      %s96 = sphi 0, %s95
      %s112 = sphi 0, %s96
      %s120 = sphi 0, %s122
      %s123 = sphi 0, %s120
      %s124 = sphi 0, %s123
      %s140 = sphi 0, %s124
    $region4: #{tpu_custom_call.1} parent=1 // loop_header_branch
      %15 = sbr.rel (%p13) target = $region8
    $region5: #{tpu_custom_call.1} parent=1 // loop_body
      %s17 = ssub.s32 %s12, 1
      %s18 = ssub.s32 %s12, 2
      %s25 = sadd.s32 1, %s20
      %p26 = scmp.ge.s32.totalorder %s25, 1
      %s27 = scalar_select %p26, 0, %s25
      %s28 = sadd.s32 1, %s19
      %s29 = scalar_select %p26, %s28, %s19
      %p30 = scmp.ge.s32.totalorder %s29, 2
      %s31 = scalar_select %p30, 0, %s29
      %s32 = ssub.s32 %s19, %s31
      %s33 = ssub.s32 %s20, %s27
      %s34 = sor.u32 %s32, %s33
      %p35 = scmp.eq.s32.totalorder %s34, 0
      %s37 = sadd.s32 %s36, 1
      %s38 = scalar_select %p35, %s36, %s37
      %p41 = pneg %p35
      %p42 = scmp.eq.s32.totalorder %s12, 1
      %p43 = por %p41, %p42
      %p44 = scmp.ne.s32.totalorder %s36, %s39
      %p45 = scmp.eq.s32.totalorder %s12, 0
      %p46 = por %p44, %p45
      %p47 = scmp.ne.s32.totalorder %s36, %s39
      %p48 = scmp.eq.s32.totalorder %s17, 1
      %p49 = por %p47, %p48
      %p50 = scmp.ne.s32.totalorder %s39, %s40
      %p51 = scmp.eq.s32.totalorder %s17, 0
      %p52 = por %p50, %p51
      %p53 = scmp.ne.s32.totalorder %s39, %s40
      %p54 = scmp.eq.s32.totalorder %s18, 1
      %p55 = por %p53, %p54
      %p57 = scmp.ne.s32.totalorder %s40, %s56
      %p58 = scmp.eq.s32.totalorder %s18, 0
      %p59 = por %p57, %p58
      %s60 = ssub.s32 %s19, %s31
      %s61 = ssub.s32 %s20, %s27
      %s62 = sor.u32 %s60, %s61
      %p63 = scmp.eq.s32.totalorder %s62, 0
      %s65 = sadd.s32 %s64, 1
      %s66 = scalar_select %p63, %s64, %s65
      %p69 = pneg %p63
      %p70 = scmp.eq.s32.totalorder %s12, 1
      %p71 = por %p69, %p70
      %p72 = scmp.ne.s32.totalorder %s64, %s67
      %p73 = scmp.eq.s32.totalorder %s12, 0
      %p74 = por %p72, %p73
      %p75 = scmp.ne.s32.totalorder %s64, %s67
      %p76 = scmp.eq.s32.totalorder %s17, 1
      %p77 = por %p75, %p76
      %p78 = scmp.ne.s32.totalorder %s67, %s68
      %p79 = scmp.eq.s32.totalorder %s17, 0
      %p80 = por %p78, %p79
      %p81 = scmp.ne.s32.totalorder %s67, %s68
      %p82 = scmp.eq.s32.totalorder %s18, 1
      %p83 = por %p81, %p82
      %p85 = scmp.ne.s32.totalorder %s68, %s84
      %p86 = scmp.eq.s32.totalorder %s18, 0
      %p87 = por %p85, %p86
      %s88 = ssub.s32 %s19, %s31
      %s89 = ssub.s32 %s20, %s27
      %s90 = sor.u32 %s88, %s89
      %p91 = scmp.eq.s32.totalorder %s90, 0
      %s93 = sadd.s32 %s92, 1
      %s94 = scalar_select %p91, %s92, %s93
      %p97 = pneg %p91
      %p98 = scmp.eq.s32.totalorder %s12, 1
      %p99 = por %p97, %p98
      %p100 = scmp.ne.s32.totalorder %s92, %s95
      %p101 = scmp.eq.s32.totalorder %s12, 0
      %p102 = por %p100, %p101
      %p103 = scmp.ne.s32.totalorder %s92, %s95
      %p104 = scmp.eq.s32.totalorder %s17, 1
      %p105 = por %p103, %p104
      %p106 = scmp.ne.s32.totalorder %s95, %s96
      %p107 = scmp.eq.s32.totalorder %s17, 0
      %p108 = por %p106, %p107
      %p109 = scmp.ne.s32.totalorder %s95, %s96
      %p110 = scmp.eq.s32.totalorder %s18, 1
      %p111 = por %p109, %p110
      %p113 = scmp.ne.s32.totalorder %s96, %s112
      %p114 = scmp.eq.s32.totalorder %s18, 0
      %p115 = por %p113, %p114
      %s116 = ssub.s32 %s19, %s31
      %s117 = ssub.s32 %s20, %s27
      %s118 = sor.u32 %s116, %s117
      %p119 = scmp.eq.s32.totalorder %s118, 0
      %s121 = sadd.s32 %s120, 1
      %s122 = scalar_select %p119, %s120, %s121
      %p125 = pneg %p119
      %p126 = scmp.eq.s32.totalorder %s12, 1
      %p127 = por %p125, %p126
      %p128 = scmp.ne.s32.totalorder %s120, %s123
      %p129 = scmp.eq.s32.totalorder %s12, 0
      %p130 = por %p128, %p129
      %p131 = scmp.ne.s32.totalorder %s120, %s123
      %p132 = scmp.eq.s32.totalorder %s17, 1
      %p133 = por %p131, %p132
      %p134 = scmp.ne.s32.totalorder %s123, %s124
      %p135 = scmp.eq.s32.totalorder %s17, 0
      %p136 = por %p134, %p135
      %p137 = scmp.ne.s32.totalorder %s123, %s124
      %p138 = scmp.eq.s32.totalorder %s18, 1
      %p139 = por %p137, %p138
      %p141 = scmp.ne.s32.totalorder %s124, %s140
      %p142 = scmp.eq.s32.totalorder %s18, 0
      %p143 = por %p141, %p142
      %p144 = scmp.le.s32.totalorder 1, %s12
      %p145 = scmp.lt.s32.totalorder %s12, 3
      %p146 = pnand %p144, %p145
      %p147 = pneg %p146
      // Predicated region
      $region9: #{tpu_custom_call.1} parent=5 // pred_check
        _
      $region10: #{tpu_custom_call.1} parent=5 // pred_check_branch
        %149 = sbr.rel (%p146) target = $region12
      $region11: #{tpu_custom_call.1} parent=5 // pred_region
        %s150 = ssub.s32 %s12, 1
      $region12: #{tpu_custom_call.1} parent=5 // pred_fallthru
        _
      %p151 = scmp.lt.s32.totalorder %s12, 2
      // Predicated region
      $region13: #{tpu_custom_call.1} parent=5 // pred_check
        %p152 = pneg %p151
      $region14: #{tpu_custom_call.1} parent=5 // pred_check_branch
        %154 = sbr.rel (%p152) target = $region16
      $region15: #{tpu_custom_call.1} parent=5 // pred_region
        // Predicated region
        $region17: #{tpu_custom_call.1} parent=15 // pred_check
          %p155 = pneg %p46
        $region18: #{tpu_custom_call.1} parent=15 // pred_check_branch
          %157 = sbr.rel (%p155) target = $region20
        $region19: #{tpu_custom_call.1} parent=15 // pred_region
          %p158 = scmp.lt.s32.totalorder %s19, 1
          %s159 = scalar_select %p158, %s19, 1
          %p160 = scmp.lt.s32.totalorder %s20, 0
          %s161 = scalar_select %p160, %s20, 0
          %s162 = sadd.s32 %s161, %s159
          %s163 = smul.addr %s162, 4
          %s164 = scalar_lea.vmem %s0, %s163
        $region20: #{tpu_custom_call.1} parent=15 // pred_fallthru
          _
        // Predicated region
        $region21: #{tpu_custom_call.1} parent=15 // pred_check
          %p165 = pneg %p74
        $region22: #{tpu_custom_call.1} parent=15 // pred_check_branch
          %167 = sbr.rel (%p165) target = $region24
        $region23: #{tpu_custom_call.1} parent=15 // pred_region
          %p168 = scmp.lt.s32.totalorder %s19, 1
          %s169 = scalar_select %p168, %s19, 1
          %p170 = scmp.lt.s32.totalorder %s20, 0
          %s171 = scalar_select %p170, %s20, 0
          %s172 = sadd.s32 %s171, %s169
          %s173 = smul.addr %s172, 4
          %s174 = scalar_lea.vmem %s1, %s173
        $region24: #{tpu_custom_call.1} parent=15 // pred_fallthru
          _
        // Predicated region
        $region25: #{tpu_custom_call.1} parent=15 // pred_check
          %p175 = pneg %p102
        $region26: #{tpu_custom_call.1} parent=15 // pred_check_branch
          %177 = sbr.rel (%p175) target = $region28
        $region27: #{tpu_custom_call.1} parent=15 // pred_region
          %p178 = scmp.lt.s32.totalorder %s19, 1
          %s179 = scalar_select %p178, %s19, 1
          %p180 = scmp.lt.s32.totalorder %s20, 0
          %s181 = scalar_select %p180, %s20, 0
          %s182 = smul.addr %s181, 2
          %s183 = smul.addr %s179, 2
          %s184 = sadd.s32 %s182, %s183
          %s185 = smul.addr %s184, 4
          %s186 = scalar_lea.vmem %s2, %s185
        $region28: #{tpu_custom_call.1} parent=15 // pred_fallthru
          _
      $region16: #{tpu_custom_call.1} parent=5 // pred_fallthru
        _
      %p187 = scmp.le.s32.totalorder 1, %s12
      %p188 = scmp.lt.s32.totalorder %s12, 3
      %p189 = pnand %p187, %p188
      %p190 = pneg %p189
      // Predicated region
      $region29: #{tpu_custom_call.1} parent=5 // pred_check
        _
      $region30: #{tpu_custom_call.1} parent=5 // pred_check_branch
        %192 = sbr.rel (%p189) target = $region32
      $region31: #{tpu_custom_call.1} parent=5 // pred_region
        %s193 = ssub.s32 %s12, 1
        %p194 = scmp.lt.s32.totalorder %s21, 1
        %s195 = scalar_select %p194, %s21, 1
        %p196 = scmp.lt.s32.totalorder %s22, 0
        %s197 = scalar_select %p196, %s22, 0
        %s198 = sadd.s32 %s197, %s195
        %s199 = smul.addr %s198, 4
        %s200 = scalar_lea.vmem %s0, %s199
        %p201 = pneg %p52
        %p202 = pneg %p49
        %p203 = scmp.lt.s32.totalorder %s21, 1
        %s204 = scalar_select %p203, %s21, 1
        %p205 = scmp.lt.s32.totalorder %s22, 0
        %s206 = scalar_select %p205, %s22, 0
        %s207 = sadd.s32 %s206, %s204
        %s208 = smul.addr %s207, 4
        %s209 = scalar_lea.vmem %s1, %s208
        %p210 = pneg %p80
        %p211 = pneg %p77
        %p212 = scmp.lt.s32.totalorder %s21, 1
        %s213 = scalar_select %p212, %s21, 1
        %p214 = scmp.lt.s32.totalorder %s22, 0
        %s215 = scalar_select %p214, %s22, 0
        %s216 = smul.addr %s215, 2
        %s217 = smul.addr %s213, 2
        %s218 = sadd.s32 %s216, %s217
        %s219 = smul.addr %s218, 4
        %s220 = scalar_lea.vmem %s2, %s219
        %p221 = pneg %p108
        %p222 = pneg %p105
        %p223 = pneg %p136
        %p224 = pneg %p133
        %s225 = sand.u32 %s123, 1
        %s226 = scalar_lea.sflag [#allocation3], %s225
        %s227 = sand.u32 %s123, 1
        %s228 = smul.addr %s227, 8
        %s229 = scalar_lea.vmem [#allocation2], %s228
        %p230 = scmp.lt.s32.totalorder %s21, 1
        %s231 = scalar_select %p230, %s21, 1
        %p232 = scmp.lt.s32.totalorder %s22, 0
        %s233 = scalar_select %p232, %s22, 0
        %s234 = sadd.s32 %s233, %s231
        %s235 = smul.addr %s234, 4
        %s236 = scalar_lea.vmem %s0, %s235
        %p237 = scmp.lt.s32.totalorder %s21, 1
        %s238 = scalar_select %p237, %s21, 1
        %p239 = scmp.lt.s32.totalorder %s22, 0
        %s240 = scalar_select %p239, %s22, 0
        %s241 = sadd.s32 %s240, %s238
        %s242 = smul.addr %s241, 4
        %s243 = scalar_lea.vmem %s1, %s242
        %p244 = scmp.lt.s32.totalorder %s21, 1
        %s245 = scalar_select %p244, %s21, 1
        %p246 = scmp.lt.s32.totalorder %s22, 0
        %s247 = scalar_select %p246, %s22, 0
        %s248 = smul.addr %s247, 2
        %s249 = smul.addr %s245, 2
        %s250 = sadd.s32 %s248, %s249
        %s251 = smul.addr %s250, 4
        %s252 = scalar_lea.vmem %s2, %s251
        %v253 = vld [vmem:[%s252] sm:$0xff]
        %255 = vst [vmem:[#allocation1] ss:$2 sm:$0xff] %v253
        %v256 = vld.sshfl [vmem:[#allocation1] sm:$0xff pattern:$0x75316420]
        %v257 = vld.sshfl [vmem:[#allocation1 + $0x8] sm:$0xff pattern:$0x75316420]
        %vm260 = vcmask 1043456
        %v261 = vsel %vm260, %v256, 0.0
        %v262 = vsel %vm260, %v257, 0.0
        %v263 = vadd.f32 %v261, %v262
        %264 = vadd.xlane.f32.xlu0 %v263
        %v265 = vpop.xlane.xlu0 %264
        %v266 = vmul.f32 %v253, %v253
        %268 = vst [vmem:[#allocation1] ss:$2 sm:$0xff] %v266
        %v269 = vld.sshfl [vmem:[#allocation1] sm:$0xff pattern:$0x75316420]
        %v270 = vld.sshfl [vmem:[#allocation1 + $0x8] sm:$0xff pattern:$0x75316420]
        %v273 = vsel %vm260, %v269, 0.0
        %v274 = vsel %vm260, %v270, 0.0
        %v275 = vadd.f32 %v273, %v274
        %276 = vadd.xlane.f32.xlu0 %v275
        %v277 = vpop.xlane.xlu0 %276
        %v278 = vmul.f32 %v265, 0.00390625
        %v279 = vmul.f32 %v277, 0.00390625
        %v280 = vmul.f32 %v278, %v278
        %v281 = vsub.f32 %v279, %v280
        %v282 = vadd.f32 %v281, 1e-05
        %v283 = vrsqrt.pop %v282
        %v284 = vmul.f32 %v283, %v282
        %v285 = vmul.f32 %v284, %v283
        %v286 = vmul.f32 0.5, %v285
        %v287 = vsub.f32 1.5, %v286
        %v288 = vmul.f32 %v283, %v287
        %vm289 = vweird.f32 %v282
        %vm290 = vweird.f32 %v283
        %vm291 = vmor %vm289, %vm290
        %v292 = vsel %vm291, %v283, %v288
        %v293 = vld [vmem:[%s236] sm:$0xf]
        %v294 = vld [vmem:[%s243] sm:$0xf]
        %v295 = vmul.f32 %v293, %v292
        %v296 = vmul.f32 %v278, %v295
        %v297 = vsub.f32 %v294, %v296
        %299 = vset.pattern.permute.xlu0 0
        %300 = vperm.xlu0 %299, %v295
        %v301 = vpop.permute.xlu0 %300
        %v303 = vunpack.c.l.s4 839922192
        %v304 = vunpack.c.0.s8 %v303
        %v305 = vperm.slane %v301, %v304
        %v307 = vmul.f32 %v253, %v305
        %309 = vset.pattern.permute.xlu0 0
        %310 = vperm.xlu0 %309, %v297
        %v311 = vpop.permute.xlu0 %310
        %v313 = vunpack.c.l.s4 839922192
        %v314 = vunpack.c.0.s8 %v313
        %v315 = vperm.slane %v311, %v314
        %v317 = vadd.f32 %v307, %v315
        %318 = vst [vmem:[%s229] sm:$0xff] %v317
        %s319 = sand.u32 %s123, 1
        %s320 = scalar_lea.sflag [#allocation3], %s319
        %s321 = sand.u32 %s123, 1
        %s322 = smul.addr %s321, 8
        %s323 = scalar_lea.vmem [#allocation2], %s322
        // Predicated region
        $region33: #{tpu_custom_call.1} parent=31 // pred_check
          %p324 = pneg %p133
        $region34: #{tpu_custom_call.1} parent=31 // pred_check_branch
          %326 = sbr.rel (%p324) target = $region36
        $region35: #{tpu_custom_call.1} parent=31 // pred_region
          %328 = vsyncadd %s320, 0
          %s329 = smul.addr %s22, 2
          %s330 = smul.addr %s21, 2
          %s331 = sadd.s32 %s329, %s330
          %s332 = smul.addr %s331, 4
          %s333 = scalar_lea.hbm %s3, %s332
          %s335 = sshll.u32 %s323, 4
          %s336 = int_to_ptr.vmem [resolvable:$true] %s335
          %s337 = sshll.u32 %s333, 4
          %s338 = int_to_ptr.hbm [resolvable:$true] %s337
          %340 = dma.vmem_to_hbm [thread:$0]  %s336, 128, %s338, %s320
        $region36: #{tpu_custom_call.1} parent=31 // pred_fallthru
          _
      $region32: #{tpu_custom_call.1} parent=5 // pred_fallthru
        _
      %p341 = scmp.le.s32.totalorder 2, %s12
      // Predicated region
      $region37: #{tpu_custom_call.1} parent=5 // pred_check
        %p342 = pneg %p341
      $region38: #{tpu_custom_call.1} parent=5 // pred_check_branch
        %344 = sbr.rel (%p342) target = $region40
      $region39: #{tpu_custom_call.1} parent=5 // pred_region
        %s345 = ssub.s32 %s12, 2
        // Predicated region
        $region41: #{tpu_custom_call.1} parent=39 // pred_check
          %p346 = pneg %p139
        $region42: #{tpu_custom_call.1} parent=39 // pred_check_branch
          %348 = sbr.rel (%p346) target = $region44
        $region43: #{tpu_custom_call.1} parent=39 // pred_region
          %s349 = sand.u32 %s124, 1
          %s350 = scalar_lea.sflag [#allocation3], %s349
          %s351 = sand.u32 %s124, 1
          %s352 = smul.addr %s351, 8
          %s353 = scalar_lea.vmem [#allocation2], %s352
          %355 = dma.done %s350, 128
        $region44: #{tpu_custom_call.1} parent=39 // pred_fallthru
          _
      $region40: #{tpu_custom_call.1} parent=5 // pred_fallthru
        _
    $region6: #{tpu_custom_call.1} parent=1 // loop_footer
      %s16 = sadd.s32 1, %s12
    $region7: #{tpu_custom_call.1} parent=1 // loop_footer_branch
      %11 = sbr.rel target = $region3
    $region8: #{tpu_custom_call.1} parent=1 // loop_exit
      _
    %356 = vsyncpa [#allocation3], 1
    %s357 = scalar_lea.sflag [#allocation3], 1
    %358 = vsyncpa %s357, 1

</llo_original>
